<compile_context>
chip_gen: v7x
topology: tpu7x:2x2x1
jax: 0.10.0
libtpu: 0.0.40
codegen_flags: <defaults>
</compile_context>

<pallas_src>
import jax
import jax.numpy as jnp
import numpy as np
from jax.experimental import pallas as pl
from jax.experimental.pallas import tpu as pltpu

_MIB = 1024 * 1024


def _dino_kernel(t_ref, s_ref, c_ref, inv_tt_ref, inv_st_ref,   # inputs
                 loss_rows_ref, csum_ref,                        # outputs
                 q_ref):                                         # scratch
    """One (row tile r, student crop v) step of the DINO loss.

    Outputs are per-row-tile partials (no cross-tile carried state), so the
    row-tile grid axis is safely "parallel" (megacore on v7x).
    """
    v = pl.program_id(1)

    # ---- per-crop student pieces (hot path; no center read here) -----------
    inv_st = inv_st_ref[0, 0]
    s_logits = s_ref[...].astype(jnp.float32) * inv_st            # (bt, D)
    s_max = jnp.max(s_logits, axis=-1, keepdims=True)
    lse = jnp.log(jnp.sum(jnp.exp(s_logits - s_max), axis=-1, keepdims=True))
    shift = lse + s_max                                           # (bt, 1)

    # ---- once per row tile (crop 0): teacher softmax + q cache + csum ------
    @pl.when(v == 0)
    def _():
        c = c_ref[...]                       # (1, D); read only in this phase
        inv_tt = inv_tt_ref[0, 0]
        t0 = t_ref[0].astype(jnp.float32)                         # (bt, D)
        t1 = t_ref[1].astype(jnp.float32)
        # Teacher column sums for the center EMA (per-tile partial output).
        csum_ref[0] = (jnp.sum(t0, axis=0, keepdims=True) +
                       jnp.sum(t1, axis=0, keepdims=True))

        def _softmax(t):
            tl = (t - c) * inv_tt
            tm = jnp.max(tl, axis=-1, keepdims=True)
            te = jnp.exp(tl - tm)
            den = jnp.sum(te, axis=-1, keepdims=True)             # (bt, 1)
            # EUP approx reciprocal + one Newton step: full f32 accuracy,
            # off the VPU divide path.
            rcp = pl.reciprocal(den, approx=True)
            rcp = rcp * (2.0 - den * rcp)
            return te * rcp

        q0 = _softmax(t0)
        q1 = _softmax(t1)
        q_ref[0] = q0              # used by student crop v == 1
        q_ref[1] = q0 + q1         # fused weights for local crops (v >= 2)

        # Student crop 0 pairs with teacher chunk 1 only (q1 is live here).
        dot1 = jnp.sum(q1 * s_logits, axis=-1, keepdims=True)
        loss_rows_ref[...] = shift - dot1

    # ---- crop 1 pairs with teacher chunk 0 only ------------------------------
    @pl.when(v == 1)
    def _():
        dot0 = jnp.sum(q_ref[0] * s_logits, axis=-1, keepdims=True)
        loss_rows_ref[...] += shift - dot0

    # ---- local crops pair with both chunks: single fused (q0+q1) reduction ---
    @pl.when(v >= 2)
    def _():
        # TODO(synk): if still VPU-bound after fusion, offload this row-dot to
        # the idle MXU (bf16 q01/s_logits, diag extraction) at ~1e-3 accuracy.
        dot01 = jnp.sum(q_ref[1] * s_logits, axis=-1, keepdims=True)
        loss_rows_ref[...] += 2.0 * shift - dot01


def _tpu_vmem_capacity_bytes(default=64 * _MIB):
    try:
        info = pltpu.get_tpu_info()
        cap = int(getattr(info, "vmem_capacity_bytes", default))
        return cap if cap > 0 else default
    except Exception:
        return default


def _pick_block_rows(batch, out_dim, itemsize, sublane, budget_bytes):
    """Largest divisor of `batch` that is a multiple of `sublane` and keeps the
    per-step VMEM working set under `budget_bytes`.

    Per bt-row working set:
      teacher (2, bt, D) double-buffered : 4 * D * itemsize
      student (bt, D)    double-buffered : 2 * D * itemsize
      cached q0 / q01    (2, bt, D) f32  : 8 * D
    """
    per_row = 6 * out_dim * itemsize + 8 * out_dim
    max_rows = max(sublane, budget_bytes // max(per_row, 1))
    best = sublane
    bt = sublane
    while bt <= batch:
        if batch % bt == 0 and bt <= max_rows:
            best = bt
        bt += sublane
    # TODO(synk): relax the bt-divides-B constraint with pl.cdiv grid + row
    # masking (masked rows excluded from loss_rows and csum) so bt stays at
    # the VMEM-optimal size for batch sizes with few divisors.
    return best


class DINOLossPallas:
    """JAX/Pallas port of the PyTorch DINOLoss forward pass."""

    def __init__(self, out_dim, ncrops, warmup_teacher_temp, teacher_temp,
                 warmup_teacher_temp_epochs, total_epochs,
                 student_temp=0.1, center_momentum=0.9):
        self.out_dim = out_dim
        self.ncrops = ncrops
        self.student_temp = student_temp
        self.center_momentum = center_momentum
        self.center = jnp.zeros((1, out_dim), dtype=jnp.float32)
        warmup_steps = warmup_teacher_temp_epochs
        total_steps = total_epochs
        if warmup_steps >= total_steps:
            self.teacher_temp_schedule = np.ones(total_steps) * teacher_temp
        else:
            self.teacher_temp_schedule = np.concatenate((
                np.linspace(warmup_teacher_temp, teacher_temp, warmup_steps),
                np.ones(total_steps - warmup_steps) * teacher_temp))

    def __call__(self, student_output, teacher_output, epoch):
        ncrops, D = self.ncrops, self.out_dim
        B = teacher_output.shape[0] // 2
        assert teacher_output.shape == (2 * B, D)
        assert student_output.shape == (ncrops * B, D)

        itemsize = jnp.dtype(student_output.dtype).itemsize
        sublane = {4: 8, 2: 16, 1: 32}.get(itemsize, 8)
        assert B % sublane == 0, (
            f"per-crop batch ({B}) must be a multiple of {sublane} for "
            f"{student_output.dtype} row tiling")

        # Generation-aware tile budget: v7x has 64 MiB VMEM/TC, v5e/v6e 128 MiB.
        cap = _tpu_vmem_capacity_bytes()
        tile_budget = 24 * _MIB if cap <= 64 * _MIB else 80 * _MIB
        bt = _pick_block_rows(B, D, itemsize, sublane, tile_budget)
        n_rt = B // bt

        n_loss_terms = sum(1 for iq in range(2) for v in range(ncrops)
                           if v != iq)

        inv_tt = jnp.asarray(1.0 / float(self.teacher_temp_schedule[epoch]),
                             dtype=jnp.float32).reshape(1, 1)
        inv_st = jnp.asarray(1.0 / float(self.student_temp),
                             dtype=jnp.float32).reshape(1, 1)

        # Scoped-VMEM request: working set + headroom, clamped to the chip.
        needed = (2 * (2 * bt * D * itemsize)     # teacher, double buffered
                  + 2 * (bt * D * itemsize)       # student, double buffered
                  + 2 * bt * D * 4                # cached q0 / q01 scratch
                  + 4 * (D * 4)                   # center + csum out blocks
                  + 2 * (bt * 4))                 # per-row loss out block
        vmem_limit = int(min(cap - 4 * _MIB, max(32 * _MIB, 2 * needed)))

        teacher3 = teacher_output.reshape(2, B, D)   # free reshape (no copy)

        loss_rows, csum_parts = pl.pallas_call(
            _dino_kernel,
            out_shape=(
                # per-row loss sums, accumulated across crops inside the kernel
                jax.ShapeDtypeStruct((B, 1), jnp.float32),
                # per-row-tile teacher column sums (combined in the wrapper)
                jax.ShapeDtypeStruct((n_rt, 1, D), jnp.float32),
            ),
            grid_spec=pltpu.PrefetchScalarGridSpec(
                num_scalar_prefetch=0,
                grid=(n_rt, ncrops),
                in_specs=[
                    # teacher: both chunks' rows of tile r; index constant
                    # along the crop axis -> DMA'd once per row tile.
                    # TODO(synk): single-buffer this block (pipeline_mode /
                    # manual DMA) to free 2*bt*D*itemsize of VMEM on v7x.
                    pl.BlockSpec((2, bt, D), lambda r, v: (0, r, 0)),
                    # student: one (bt, D) block per (row tile, crop);
                    # each block DMA'd exactly once over the whole grid.
                    pl.BlockSpec((bt, D), lambda r, v: (v * n_rt + r, 0)),
                    # center: resident for the whole grid (read only at v==0).
                    pl.BlockSpec((1, D), lambda r, v: (0, 0)),
                    # pre-inverted temperatures live in SMEM.
                    pl.BlockSpec(memory_space=pltpu.MemorySpace.SMEM),
                    pl.BlockSpec(memory_space=pltpu.MemorySpace.SMEM),
                ],
                out_specs=(
                    pl.BlockSpec((bt, 1), lambda r, v: (r, 0)),
                    pl.BlockSpec((1, 1, D), lambda r, v: (r, 0, 0)),
                ),
                scratch_shapes=[
                    pltpu.VMEM((2, bt, D), jnp.float32),   # cached q0, q0+q1
                ],
            ),
            compiler_params=pltpu.CompilerParams(
                # Row-tile axis is parallel: per-tile outputs, no carried
                # scratch across tiles -> v7x shards it over both TensorCores.
                dimension_semantics=("parallel", "arbitrary"),
                vmem_limit_bytes=vmem_limit,
            ),
        )(teacher3, student_output, self.center, inv_tt, inv_st)

        # Tiny wrapper-side finalize (combines per-tile / per-core partials).
        loss = jnp.sum(loss_rows) / jnp.float32(n_loss_terms * B)
        batch_center = jnp.sum(csum_parts, axis=0) / jnp.float32(2 * B)  # (1,D)
        self.center = (self.center * jnp.float32(self.center_momentum)
                       + batch_center * jnp.float32(1.0 - self.center_momentum))
        return loss


def _reference(student, teacher, center, ttemp, stemp, ncrops, momentum):
    """Pure-JAX reference replicating the PyTorch forward exactly."""
    s_chunks = jnp.split(student / stemp, ncrops, axis=0)
    q_all = jax.nn.softmax((teacher - center) / ttemp, axis=-1)
    t_chunks = jnp.split(q_all, 2, axis=0)
    total, n = 0.0, 0
    for iq, q in enumerate(t_chunks):
        for v in range(ncrops):
            if v == iq:
                continue
            loss = jnp.sum(-q * jax.nn.log_softmax(s_chunks[v], axis=-1),
                           axis=-1)
            total = total + loss.mean()
            n += 1
    total = total / n
    new_center = center * momentum + \
        jnp.mean(teacher, axis=0, keepdims=True) * (1.0 - momentum)
    return total, new_center


if __name__ == "__main__":
    # Small, deterministic example consistent with the module.
    out_dim = 128      # out_dim (lane dimension)
    ncrops = 4
    B = 8              # per-crop batch size
    epoch = 1

    key = jax.random.PRNGKey(0)
    k1, k2 = jax.random.split(key)
    student_output = jax.random.normal(k1, (ncrops * B, out_dim),
                                       dtype=jnp.float32)
    teacher_output = jax.random.normal(k2, (2 * B, out_dim),
                                       dtype=jnp.float32)

    dino = DINOLossPallas(out_dim=out_dim, ncrops=ncrops,
                          warmup_teacher_temp=0.04, teacher_temp=0.07,
                          warmup_teacher_temp_epochs=3, total_epochs=10,
                          student_temp=0.1, center_momentum=0.9)

    center_before = dino.center
    loss = dino(student_output, teacher_output, epoch)
    loss = jax.block_until_ready(loss)
    new_center = jax.block_until_ready(dino.center)

    # Verify against a pure-JAX reference.  (Loss tolerance is slightly looser
    # than f32 eps to cover the algebraic rearrangement of the cross-entropy
    # and the Newton-refined approximate reciprocal in the teacher softmax.)
    ttemp = float(dino.teacher_temp_schedule[epoch])
    ref_loss, ref_center = _reference(student_output, teacher_output,
                                      center_before, ttemp,
                                      dino.student_temp, ncrops,
                                      dino.center_momentum)
    np.testing.assert_allclose(np.asarray(loss), np.asarray(ref_loss),
                               rtol=1e-4, atol=1e-4)
    np.testing.assert_allclose(np.asarray(new_center), np.asarray(ref_center),
                               rtol=1e-5, atol=1e-6)

    print("KERNEL_OK")
</pallas_src>

<mosaic_0001>
module attributes {stable_mosaic.version = 11 : i64} {
  func.func @_dino_kernel(%arg0: i32, %arg1: i32, %arg2: memref<2x8x128xf32, #tpu.memory_space<vmem>>, %arg3: memref<8x128xf32, #tpu.memory_space<vmem>>, %arg4: memref<1x128xf32, #tpu.memory_space<vmem>>, %arg5: memref<1x1xf32, #tpu.memory_space<smem>>, %arg6: memref<1x1xf32, #tpu.memory_space<smem>>, %arg7: memref<8x1xf32, #tpu.memory_space<vmem>>, %arg8: memref<1x1x128xf32, #tpu.memory_space<vmem>>, %arg9: memref<2x8x128xf32, #tpu.memory_space<vmem>>) attributes {dimension_semantics = [#tpu.dimension_semantics<parallel>, #tpu.dimension_semantics<arbitrary>], iteration_bounds = array<i64: 1, 4>, scalar_prefetch = 0 : i64, scratch_operands = 1 : i64, tpu.core_type = #tpu.core_type<tc>, window_params = [{transform_indices = @transform_0, window_bounds = array<i64: 2, 8, 128>}, {transform_indices = @transform_1, window_bounds = array<i64: 8, 128>}, {pipeline_mode = #tpu.pipeline_mode<synchronous>, transform_indices = @transform_2, window_bounds = array<i64: 1, 128>}, {transform_indices = @transform_3, window_bounds = array<i64: 1, 1>}, {transform_indices = @transform_4, window_bounds = array<i64: 1, 1>}, {transform_indices = @transform_5, window_bounds = array<i64: 8, 1>}, {transform_indices = @transform_6, window_bounds = array<i64: 1, 1, 128>}]} {
    %c0 = arith.constant 0 : index
    %c0_0 = arith.constant 0 : index
    %0 = memref.load %arg6[%c0, %c0_0] : memref<1x1xf32, #tpu.memory_space<smem>>
    %c0_1 = arith.constant 0 : index
    %c0_2 = arith.constant 0 : index
    %1 = vector.load %arg3[%c0_1, %c0_2] : memref<8x128xf32, #tpu.memory_space<vmem>>, vector<8x128xf32>
    %2 = vector.broadcast %0 : f32 to vector<8x128xf32>
    %3 = arith.mulf %1, %2 : vector<8x128xf32>
    %cst = arith.constant dense<0xFF800000> : vector<8xf32>
    %4 = vector.multi_reduction <maximumf>, %3, %cst [1] : vector<8x128xf32> to vector<8xf32>
    %5 = vector.shape_cast %4 : vector<8xf32> to vector<8x1xf32>
    %6 = vector.broadcast %5 : vector<8x1xf32> to vector<8x128xf32>
    %7 = arith.subf %3, %6 : vector<8x128xf32>
    %8 = math.exp %7 : vector<8x128xf32>
    %cst_3 = arith.constant dense<0.000000e+00> : vector<8xf32>
    %9 = vector.multi_reduction <add>, %8, %cst_3 [1] : vector<8x128xf32> to vector<8xf32>
    %10 = vector.shape_cast %9 : vector<8xf32> to vector<8x1xf32>
    %11 = math.log %10 : vector<8x1xf32>
    %12 = arith.addf %11, %5 : vector<8x1xf32>
    %c0_i32 = arith.constant 0 : i32
    %13 = arith.cmpi eq, %arg1, %c0_i32 : i32
    %14 = arith.extui %13 : i1 to i32
    %c0_i32_4 = arith.constant 0 : i32
    %15 = arith.cmpi ne, %14, %c0_i32_4 : i32
    scf.if %15 {
      %c0_7 = arith.constant 0 : index
      %c0_8 = arith.constant 0 : index
      %22 = vector.load %arg4[%c0_7, %c0_8] : memref<1x128xf32, #tpu.memory_space<vmem>>, vector<1x128xf32>
      %c0_9 = arith.constant 0 : index
      %c0_10 = arith.constant 0 : index
      %23 = memref.load %arg5[%c0_9, %c0_10] : memref<1x1xf32, #tpu.memory_space<smem>>
      %c0_11 = arith.constant 0 : index
      %c0_12 = arith.constant 0 : index
      %c0_13 = arith.constant 0 : index
      %24 = vector.load %arg2[%c0_11, %c0_12, %c0_13] : memref<2x8x128xf32, #tpu.memory_space<vmem>>, vector<1x8x128xf32>
      %25 = vector.shape_cast %24 : vector<1x8x128xf32> to vector<8x128xf32>
      %c1 = arith.constant 1 : index
      %c0_14 = arith.constant 0 : index
      %c0_15 = arith.constant 0 : index
      %26 = vector.load %arg2[%c1, %c0_14, %c0_15] : memref<2x8x128xf32, #tpu.memory_space<vmem>>, vector<1x8x128xf32>
      %27 = vector.shape_cast %26 : vector<1x8x128xf32> to vector<8x128xf32>
      %cst_16 = arith.constant dense<0.000000e+00> : vector<128xf32>
      %28 = vector.multi_reduction <add>, %25, %cst_16 [0] : vector<8x128xf32> to vector<128xf32>
      %29 = vector.shape_cast %28 : vector<128xf32> to vector<1x128xf32>
      %cst_17 = arith.constant dense<0.000000e+00> : vector<128xf32>
      %30 = vector.multi_reduction <add>, %27, %cst_17 [0] : vector<8x128xf32> to vector<128xf32>
      %31 = vector.shape_cast %30 : vector<128xf32> to vector<1x128xf32>
      %32 = arith.addf %29, %31 : vector<1x128xf32>
      %c0_18 = arith.constant 0 : index
      %c0_19 = arith.constant 0 : index
      %c0_20 = arith.constant 0 : index
      %33 = vector.load %arg8[%c0_18, %c0_19, %c0_20] : memref<1x1x128xf32, #tpu.memory_space<vmem>>, vector<1x1x128xf32>
      %34 = vector.shape_cast %33 : vector<1x1x128xf32> to vector<1x128xf32>
      %35 = vector.shape_cast %32 : vector<1x128xf32> to vector<1x1x128xf32>
      tpu.vector_store %arg8[%c0_18, %c0_19, %c0_20], %35 {strides = array<i32>} : memref<1x1x128xf32, #tpu.memory_space<vmem>>, vector<1x1x128xf32>,
      %36 = vector.broadcast %22 : vector<1x128xf32> to vector<8x128xf32>
      %37 = arith.subf %25, %36 : vector<8x128xf32>
      %38 = vector.broadcast %23 : f32 to vector<8x128xf32>
      %39 = arith.mulf %37, %38 : vector<8x128xf32>
      %cst_21 = arith.constant dense<0xFF800000> : vector<8xf32>
      %40 = vector.multi_reduction <maximumf>, %39, %cst_21 [1] : vector<8x128xf32> to vector<8xf32>
      %41 = vector.shape_cast %40 : vector<8xf32> to vector<8x1xf32>
      %42 = vector.broadcast %41 : vector<8x1xf32> to vector<8x128xf32>
      %43 = arith.subf %39, %42 : vector<8x128xf32>
      %44 = math.exp %43 : vector<8x128xf32>
      %cst_22 = arith.constant dense<0.000000e+00> : vector<8xf32>
      %45 = vector.multi_reduction <add>, %44, %cst_22 [1] : vector<8x128xf32> to vector<8xf32>
      %46 = vector.shape_cast %45 : vector<8xf32> to vector<8x1xf32>
      %47 = tpu.reciprocal %46 {approx = true} : vector<8x1xf32> -> vector<8x1xf32>
      %48 = arith.mulf %46, %47 : vector<8x1xf32>
      %cst_23 = arith.constant 2.000000e+00 : f32
      %49 = vector.broadcast %cst_23 : f32 to vector<8x1xf32>
      %50 = arith.subf %49, %48 : vector<8x1xf32>
      %51 = arith.mulf %47, %50 : vector<8x1xf32>
      %52 = vector.broadcast %51 : vector<8x1xf32> to vector<8x128xf32>
      %53 = arith.mulf %44, %52 : vector<8x128xf32>
      %54 = vector.broadcast %22 : vector<1x128xf32> to vector<8x128xf32>
      %55 = arith.subf %27, %54 : vector<8x128xf32>
      %56 = vector.broadcast %23 : f32 to vector<8x128xf32>
      %57 = arith.mulf %55, %56 : vector<8x128xf32>
      %cst_24 = arith.constant dense<0xFF800000> : vector<8xf32>
      %58 = vector.multi_reduction <maximumf>, %57, %cst_24 [1] : vector<8x128xf32> to vector<8xf32>
      %59 = vector.shape_cast %58 : vector<8xf32> to vector<8x1xf32>
      %60 = vector.broadcast %59 : vector<8x1xf32> to vector<8x128xf32>
      %61 = arith.subf %57, %60 : vector<8x128xf32>
      %62 = math.exp %61 : vector<8x128xf32>
      %cst_25 = arith.constant dense<0.000000e+00> : vector<8xf32>
      %63 = vector.multi_reduction <add>, %62, %cst_25 [1] : vector<8x128xf32> to vector<8xf32>
      %64 = vector.shape_cast %63 : vector<8xf32> to vector<8x1xf32>
      %65 = tpu.reciprocal %64 {approx = true} : vector<8x1xf32> -> vector<8x1xf32>
      %66 = arith.mulf %64, %65 : vector<8x1xf32>
      %cst_26 = arith.constant 2.000000e+00 : f32
      %67 = vector.broadcast %cst_26 : f32 to vector<8x1xf32>
      %68 = arith.subf %67, %66 : vector<8x1xf32>
      %69 = arith.mulf %65, %68 : vector<8x1xf32>
      %70 = vector.broadcast %69 : vector<8x1xf32> to vector<8x128xf32>
      %71 = arith.mulf %62, %70 : vector<8x128xf32>
      %c0_27 = arith.constant 0 : index
      %c0_28 = arith.constant 0 : index
      %c0_29 = arith.constant 0 : index
      %72 = vector.load %arg9[%c0_27, %c0_28, %c0_29] : memref<2x8x128xf32, #tpu.memory_space<vmem>>, vector<1x8x128xf32>
      %73 = vector.shape_cast %72 : vector<1x8x128xf32> to vector<8x128xf32>
      %74 = vector.shape_cast %53 : vector<8x128xf32> to vector<1x8x128xf32>
      tpu.vector_store %arg9[%c0_27, %c0_28, %c0_29], %74 {strides = array<i32>} : memref<2x8x128xf32, #tpu.memory_space<vmem>>, vector<1x8x128xf32>,
      %75 = arith.addf %53, %71 : vector<8x128xf32>
      %c1_30 = arith.constant 1 : index
      %c0_31 = arith.constant 0 : index
      %c0_32 = arith.constant 0 : index
      %76 = vector.load %arg9[%c1_30, %c0_31, %c0_32] : memref<2x8x128xf32, #tpu.memory_space<vmem>>, vector<1x8x128xf32>
      %77 = vector.shape_cast %76 : vector<1x8x128xf32> to vector<8x128xf32>
      %78 = vector.shape_cast %75 : vector<8x128xf32> to vector<1x8x128xf32>
      tpu.vector_store %arg9[%c1_30, %c0_31, %c0_32], %78 {strides = array<i32>} : memref<2x8x128xf32, #tpu.memory_space<vmem>>, vector<1x8x128xf32>,
      %79 = arith.mulf %71, %3 : vector<8x128xf32>
      %cst_33 = arith.constant dense<0.000000e+00> : vector<8xf32>
      %80 = vector.multi_reduction <add>, %79, %cst_33 [1] : vector<8x128xf32> to vector<8xf32>
      %81 = vector.shape_cast %80 : vector<8xf32> to vector<8x1xf32>
      %82 = arith.subf %12, %81 : vector<8x1xf32>
      %c0_34 = arith.constant 0 : index
      %c0_35 = arith.constant 0 : index
      %83 = vector.load %arg7[%c0_34, %c0_35] : memref<8x1xf32, #tpu.memory_space<vmem>>, vector<8x1xf32>
      tpu.vector_store %arg7[%c0_34, %c0_35], %82 {strides = array<i32>} : memref<8x1xf32, #tpu.memory_space<vmem>>, vector<8x1xf32>,
    } else {
    }
    %c1_i32 = arith.constant 1 : i32
    %16 = arith.cmpi eq, %arg1, %c1_i32 : i32
    %17 = arith.extui %16 : i1 to i32
    %c0_i32_5 = arith.constant 0 : i32
    %18 = arith.cmpi ne, %17, %c0_i32_5 : i32
    scf.if %18 {
      %c0_7 = arith.constant 0 : index
      %c0_8 = arith.constant 0 : index
      %c0_9 = arith.constant 0 : index
      %22 = vector.load %arg9[%c0_7, %c0_8, %c0_9] : memref<2x8x128xf32, #tpu.memory_space<vmem>>, vector<1x8x128xf32>
      %23 = vector.shape_cast %22 : vector<1x8x128xf32> to vector<8x128xf32>
      %24 = arith.mulf %23, %3 : vector<8x128xf32>
      %cst_10 = arith.constant dense<0.000000e+00> : vector<8xf32>
      %25 = vector.multi_reduction <add>, %24, %cst_10 [1] : vector<8x128xf32> to vector<8xf32>
      %26 = vector.shape_cast %25 : vector<8xf32> to vector<8x1xf32>
      %c0_11 = arith.constant 0 : index
      %c0_12 = arith.constant 0 : index
      %27 = vector.load %arg7[%c0_11, %c0_12] : memref<8x1xf32, #tpu.memory_space<vmem>>, vector<8x1xf32>
      %28 = arith.subf %12, %26 : vector<8x1xf32>
      %29 = arith.addf %27, %28 : vector<8x1xf32>
      %c0_13 = arith.constant 0 : index
      %c0_14 = arith.constant 0 : index
      %30 = vector.load %arg7[%c0_13, %c0_14] : memref<8x1xf32, #tpu.memory_space<vmem>>, vector<8x1xf32>
      tpu.vector_store %arg7[%c0_13, %c0_14], %29 {strides = array<i32>} : memref<8x1xf32, #tpu.memory_space<vmem>>, vector<8x1xf32>,
    } else {
    }
    %c2_i32 = arith.constant 2 : i32
    %19 = arith.cmpi sge, %arg1, %c2_i32 : i32
    %20 = arith.extui %19 : i1 to i32
    %c0_i32_6 = arith.constant 0 : i32
    %21 = arith.cmpi ne, %20, %c0_i32_6 : i32
    scf.if %21 {
      %c1 = arith.constant 1 : index
      %c0_7 = arith.constant 0 : index
      %c0_8 = arith.constant 0 : index
      %22 = vector.load %arg9[%c1, %c0_7, %c0_8] : memref<2x8x128xf32, #tpu.memory_space<vmem>>, vector<1x8x128xf32>
      %23 = vector.shape_cast %22 : vector<1x8x128xf32> to vector<8x128xf32>
      %24 = arith.mulf %23, %3 : vector<8x128xf32>
      %cst_9 = arith.constant dense<0.000000e+00> : vector<8xf32>
      %25 = vector.multi_reduction <add>, %24, %cst_9 [1] : vector<8x128xf32> to vector<8xf32>
      %26 = vector.shape_cast %25 : vector<8xf32> to vector<8x1xf32>
      %c0_10 = arith.constant 0 : index
      %c0_11 = arith.constant 0 : index
      %27 = vector.load %arg7[%c0_10, %c0_11] : memref<8x1xf32, #tpu.memory_space<vmem>>, vector<8x1xf32>
      %cst_12 = arith.constant 2.000000e+00 : f32
      %28 = vector.broadcast %cst_12 : f32 to vector<8x1xf32>
      %29 = arith.mulf %28, %12 : vector<8x1xf32>
      %30 = arith.subf %29, %26 : vector<8x1xf32>
      %31 = arith.addf %27, %30 : vector<8x1xf32>
      %c0_13 = arith.constant 0 : index
      %c0_14 = arith.constant 0 : index
      %32 = vector.load %arg7[%c0_13, %c0_14] : memref<8x1xf32, #tpu.memory_space<vmem>>, vector<8x1xf32>
      tpu.vector_store %arg7[%c0_13, %c0_14], %31 {strides = array<i32>} : memref<8x1xf32, #tpu.memory_space<vmem>>, vector<8x1xf32>,
    } else {
    }
    return
  }
  func.func @transform_0(%arg0: i32, %arg1: i32) -> (i32, i32, i32) {
    %c0_i32 = arith.constant 0 : i32
    %c0_i32_0 = arith.constant 0 : i32
    %c0_i32_1 = arith.constant 0 : i32
    return %c0_i32, %arg0, %c0_i32_0 : i32, i32, i32
  }
  func.func @transform_1(%arg0: i32, %arg1: i32) -> (i32, i32) {
    %c1_i32 = arith.constant 1 : i32
    %0 = arith.muli %arg1, %c1_i32 : i32
    %1 = arith.addi %0, %arg0 : i32
    %c0_i32 = arith.constant 0 : i32
    %c0_i32_0 = arith.constant 0 : i32
    return %1, %c0_i32 : i32, i32
  }
  func.func @transform_2(%arg0: i32, %arg1: i32) -> (i32, i32) {
    %c0_i32 = arith.constant 0 : i32
    %c0_i32_0 = arith.constant 0 : i32
    %c0_i32_1 = arith.constant 0 : i32
    return %c0_i32, %c0_i32_0 : i32, i32
  }
  func.func @transform_3(%arg0: i32, %arg1: i32) -> (i32, i32) {
    %c0_i32 = arith.constant 0 : i32
    %c0_i32_0 = arith.constant 0 : i32
    %c0_i32_1 = arith.constant 0 : i32
    return %c0_i32, %c0_i32_0 : i32, i32
  }
  func.func @transform_4(%arg0: i32, %arg1: i32) -> (i32, i32) {
    %c0_i32 = arith.constant 0 : i32
    %c0_i32_0 = arith.constant 0 : i32
    %c0_i32_1 = arith.constant 0 : i32
    return %c0_i32, %c0_i32_0 : i32, i32
  }
  func.func @transform_5(%arg0: i32, %arg1: i32) -> (i32, i32) {
    %c0_i32 = arith.constant 0 : i32
    %c0_i32_0 = arith.constant 0 : i32
    return %arg0, %c0_i32 : i32, i32
  }
  func.func @transform_6(%arg0: i32, %arg1: i32) -> (i32, i32, i32) {
    %c0_i32 = arith.constant 0 : i32
    %c0_i32_0 = arith.constant 0 : i32
    %c0_i32_1 = arith.constant 0 : i32
    return %arg0, %c0_i32, %c0_i32_0 : i32, i32, i32
  }
}

</mosaic_0001>

<llo_original>
// kernel: tpu_custom_call.1
$region0: #{tpu_custom_call.1}
  #allocation0 [shape = 'u32[]', space=smem, size = 0x4, offset = 0x4, fixed_abs, tag = 'smem constant byte address 0x4 - core index']
  #allocation1 [shape = 'u32[144,128]{1,0:T(1,128)}', space=vmem, size = 0x12000, scoped, tag = 'internal scratch']
  #allocation2 [shape = 'f32[2,8,128]{2,1,0:T(8,128)}', space=vmem, size = 0x2000, scoped, tag = 'scratch operand']
  #allocation3 [shape = 'f32[1,1]{1,0:T(1,128)S(6)}', space=smem, size = 0x200, scoped, tag = 'scoped memory for tpu_custom_call.1']
  #allocation4 [shape = 'f32[1,1]{1,0:T(1,128)S(6)}', space=smem, size = 0x200, scoped, tag = 'scoped memory for tpu_custom_call.1']
  %s0 = inlined_call_operand.hbm [shape: f32[2,8,128], index: 0, kind: input, shape index: {}]
  %s1 = inlined_call_operand.hbm [shape: f32[32,128], index: 1, kind: input, shape index: {}]
  %s2 = inlined_call_operand.vmem [shape: f32[1,128], index: 2, kind: input, shape index: {}]
  %s3 = inlined_call_operand.<no memory space> [shape: f32[1,1], index: 3, kind: input, shape index: {}]
  %s4 = inlined_call_operand.<no memory space> [shape: f32[1,1], index: 4, kind: input, shape index: {}]
  %s5 = inlined_call_operand.vmem [shape: f32[8,1], index: 5, kind: output, shape index: {0}]
  %s6 = inlined_call_operand.hbm [shape: f32[1,1,128], index: 6, kind: output, shape index: {1}]
  %7 = xla_tuple %s5, %s6
  %s8 = sld [smem:[#allocation0]]
  $region81: #{tpu_custom_call.1} parent=0
    _
  %s10 = ssub.s32 1, %s8
  %s11 = scalar_select 0, %s10, %s8
  %12 = sst [smem:[#allocation3]] %s3
  %13 = sst [smem:[#allocation4]] %s4
  $region1: #{tpu_custom_call.1} parent=0
    #allocation5 [shape = 'u8[8192]{0}', space=vmem, size = 0x2000, scoped, tag = 'input window, operand 0, single buffered']
    #allocation6 [shape = 's32[2]{0}', space=sflag, size = 0x8, scoped, tag = 'scoped memory for tpu_custom_call.1']
    #allocation7 [shape = 's32[2]{0}', space=sflag, size = 0x8, scoped, tag = 'scoped memory for tpu_custom_call.1']
    #allocation8 [shape = 'u8[8192]{0}', space=vmem, size = 0x2000, scoped, tag = 'input window, operand 1']
    #allocation9 [shape = 's32[2]{0}', space=sflag, size = 0x8, scoped, tag = 'scoped memory for tpu_custom_call.1']
    #allocation10 [shape = 'u8[512]{0}', space=vmem, size = 0x400, scoped, tag = 'output window, operand 1, single buffered']
    %14 = vsyncpa [#allocation6], 0
    %15 = vsyncpa [#allocation9], 0
    %s16 = scalar_lea.sflag [#allocation9], 1
    %17 = vsyncpa %s16, 0
    %18 = vsyncpa [#allocation7], 0
    loop: start=0, step=1, limit=6
    $region2: #{tpu_custom_call.1} parent=1 // loop_pre_header
      _
    $region3: #{tpu_custom_call.1} parent=1 // loop_header
      %s20 = sphi 0, %s24
      %p21 = scmp.ge.s32.totalorder %s20, 6
      %s27 = sphi 0, %s39
      %s28 = sphi 0, %s35
      %s29 = sphi 0, %s27
      %s30 = sphi 0, %s28
      %s31 = sphi 0, %s29
      %s32 = sphi 0, %s30
      %s42 = sphi 0, %s44
      %s45 = sphi 0, %s42
      %s46 = sphi 0, %s45
      %s62 = sphi 0, %s46
      %s70 = sphi 0, %s72
      %s73 = sphi 0, %s70
      %s74 = sphi 0, %s73
      %s90 = sphi 0, %s74
      %s94 = sphi 0, %s94
      %s96 = sphi 0, %s94
      %s97 = sphi 0, %s96
      %s111 = sphi 0, %s97
      %s115 = sphi 0, %s115
      %s117 = sphi 0, %s115
      %s118 = sphi 0, %s117
      %s132 = sphi 0, %s118
      %s136 = sphi 0, %s136
      %s138 = sphi 0, %s136
      %s139 = sphi 0, %s138
      %s153 = sphi 0, %s139
      %s159 = sphi 0, %s161
      %s162 = sphi 0, %s159
      %s163 = sphi 0, %s162
      %s179 = sphi 0, %s163
      %s185 = sphi 0, %s187
      %s188 = sphi 0, %s185
      %s189 = sphi 0, %s188
      %s205 = sphi 0, %s189
    $region4: #{tpu_custom_call.1} parent=1 // loop_header_branch
      %23 = sbr.rel (%p21) target = $region8
    $region5: #{tpu_custom_call.1} parent=1 // loop_body
      %s25 = ssub.s32 %s20, 1
      %s26 = ssub.s32 %s20, 2
      %s33 = sadd.s32 1, %s28
      %p34 = scmp.ge.s32.totalorder %s33, 4
      %s35 = scalar_select %p34, 0, %s33
      %s36 = sadd.s32 1, %s27
      %s37 = scalar_select %p34, %s36, %s27
      %p38 = scmp.ge.s32.totalorder %s37, 1
      %s39 = scalar_select %p38, 0, %s37
      %s40 = ssub.s32 %s27, %s39
      %p41 = scmp.eq.s32.totalorder %s40, 0
      %s43 = sadd.s32 %s42, 1
      %s44 = scalar_select %p41, %s42, %s43
      %p47 = pneg %p41
      %p48 = scmp.eq.s32.totalorder %s20, 3
      %p49 = por %p47, %p48
      %p50 = scmp.ne.s32.totalorder %s42, %s45
      %p51 = scmp.eq.s32.totalorder %s20, 0
      %p52 = por %p50, %p51
      %p53 = scmp.ne.s32.totalorder %s42, %s45
      %p54 = scmp.eq.s32.totalorder %s25, 3
      %p55 = por %p53, %p54
      %p56 = scmp.ne.s32.totalorder %s45, %s46
      %p57 = scmp.eq.s32.totalorder %s25, 0
      %p58 = por %p56, %p57
      %p59 = scmp.ne.s32.totalorder %s45, %s46
      %p60 = scmp.eq.s32.totalorder %s26, 3
      %p61 = por %p59, %p60
      %p63 = scmp.ne.s32.totalorder %s46, %s62
      %p64 = scmp.eq.s32.totalorder %s26, 0
      %p65 = por %p63, %p64
      %s66 = sadd.s32 %s28, %s27
      %s67 = sadd.s32 %s35, %s39
      %s68 = ssub.s32 %s66, %s67
      %p69 = scmp.eq.s32.totalorder %s68, 0
      %s71 = sadd.s32 %s70, 1
      %s72 = scalar_select %p69, %s70, %s71
      %p75 = pneg %p69
      %p76 = scmp.eq.s32.totalorder %s20, 3
      %p77 = por %p75, %p76
      %p78 = scmp.ne.s32.totalorder %s70, %s73
      %p79 = scmp.eq.s32.totalorder %s20, 0
      %p80 = por %p78, %p79
      %p81 = scmp.ne.s32.totalorder %s70, %s73
      %p82 = scmp.eq.s32.totalorder %s25, 3
      %p83 = por %p81, %p82
      %p84 = scmp.ne.s32.totalorder %s73, %s74
      %p85 = scmp.eq.s32.totalorder %s25, 0
      %p86 = por %p84, %p85
      %p87 = scmp.ne.s32.totalorder %s73, %s74
      %p88 = scmp.eq.s32.totalorder %s26, 3
      %p89 = por %p87, %p88
      %p91 = scmp.ne.s32.totalorder %s74, %s90
      %p92 = scmp.eq.s32.totalorder %s26, 0
      %p93 = por %p91, %p92
      %s95 = sadd.s32 %s94, 1
      %p98 = scmp.eq.s32.totalorder %s20, 3
      %p99 = scmp.ne.s32.totalorder %s94, %s96
      %p100 = scmp.eq.s32.totalorder %s20, 0
      %p101 = por %p99, %p100
      %p102 = scmp.ne.s32.totalorder %s94, %s96
      %p103 = scmp.eq.s32.totalorder %s25, 3
      %p104 = por %p102, %p103
      %p105 = scmp.ne.s32.totalorder %s96, %s97
      %p106 = scmp.eq.s32.totalorder %s25, 0
      %p107 = por %p105, %p106
      %p108 = scmp.ne.s32.totalorder %s96, %s97
      %p109 = scmp.eq.s32.totalorder %s26, 3
      %p110 = por %p108, %p109
      %p112 = scmp.ne.s32.totalorder %s97, %s111
      %p113 = scmp.eq.s32.totalorder %s26, 0
      %p114 = por %p112, %p113
      %s116 = sadd.s32 %s115, 1
      %p119 = scmp.eq.s32.totalorder %s20, 3
      %p120 = scmp.ne.s32.totalorder %s115, %s117
      %p121 = scmp.eq.s32.totalorder %s20, 0
      %p122 = por %p120, %p121
      %p123 = scmp.ne.s32.totalorder %s115, %s117
      %p124 = scmp.eq.s32.totalorder %s25, 3
      %p125 = por %p123, %p124
      %p126 = scmp.ne.s32.totalorder %s117, %s118
      %p127 = scmp.eq.s32.totalorder %s25, 0
      %p128 = por %p126, %p127
      %p129 = scmp.ne.s32.totalorder %s117, %s118
      %p130 = scmp.eq.s32.totalorder %s26, 3
      %p131 = por %p129, %p130
      %p133 = scmp.ne.s32.totalorder %s118, %s132
      %p134 = scmp.eq.s32.totalorder %s26, 0
      %p135 = por %p133, %p134
      %s137 = sadd.s32 %s136, 1
      %p140 = scmp.eq.s32.totalorder %s20, 3
      %p141 = scmp.ne.s32.totalorder %s136, %s138
      %p142 = scmp.eq.s32.totalorder %s20, 0
      %p143 = por %p141, %p142
      %p144 = scmp.ne.s32.totalorder %s136, %s138
      %p145 = scmp.eq.s32.totalorder %s25, 3
      %p146 = por %p144, %p145
      %p147 = scmp.ne.s32.totalorder %s138, %s139
      %p148 = scmp.eq.s32.totalorder %s25, 0
      %p149 = por %p147, %p148
      %p150 = scmp.ne.s32.totalorder %s138, %s139
      %p151 = scmp.eq.s32.totalorder %s26, 3
      %p152 = por %p150, %p151
      %p154 = scmp.ne.s32.totalorder %s139, %s153
      %p155 = scmp.eq.s32.totalorder %s26, 0
      %p156 = por %p154, %p155
      %s157 = ssub.s32 %s27, %s39
      %p158 = scmp.eq.s32.totalorder %s157, 0
      %s160 = sadd.s32 %s159, 1
      %s161 = scalar_select %p158, %s159, %s160
      %p164 = pneg %p158
      %p165 = scmp.eq.s32.totalorder %s20, 3
      %p166 = por %p164, %p165
      %p167 = scmp.ne.s32.totalorder %s159, %s162
      %p168 = scmp.eq.s32.totalorder %s20, 0
      %p169 = por %p167, %p168
      %p170 = scmp.ne.s32.totalorder %s159, %s162
      %p171 = scmp.eq.s32.totalorder %s25, 3
      %p172 = por %p170, %p171
      %p173 = scmp.ne.s32.totalorder %s162, %s163
      %p174 = scmp.eq.s32.totalorder %s25, 0
      %p175 = por %p173, %p174
      %p176 = scmp.ne.s32.totalorder %s162, %s163
      %p177 = scmp.eq.s32.totalorder %s26, 3
      %p178 = por %p176, %p177
      %p180 = scmp.ne.s32.totalorder %s163, %s179
      %p181 = scmp.eq.s32.totalorder %s26, 0
      %p182 = por %p180, %p181
      %s183 = ssub.s32 %s27, %s39
      %p184 = scmp.eq.s32.totalorder %s183, 0
      %s186 = sadd.s32 %s185, 1
      %s187 = scalar_select %p184, %s185, %s186
      %p190 = pneg %p184
      %p191 = scmp.eq.s32.totalorder %s20, 3
      %p192 = por %p190, %p191
      %p193 = scmp.ne.s32.totalorder %s185, %s188
      %p194 = scmp.eq.s32.totalorder %s20, 0
      %p195 = por %p193, %p194
      %p196 = scmp.ne.s32.totalorder %s185, %s188
      %p197 = scmp.eq.s32.totalorder %s25, 3
      %p198 = por %p196, %p197
      %p199 = scmp.ne.s32.totalorder %s188, %s189
      %p200 = scmp.eq.s32.totalorder %s25, 0
      %p201 = por %p199, %p200
      %p202 = scmp.ne.s32.totalorder %s188, %s189
      %p203 = scmp.eq.s32.totalorder %s26, 3
      %p204 = por %p202, %p203
      %p206 = scmp.ne.s32.totalorder %s189, %s205
      %p207 = scmp.eq.s32.totalorder %s26, 0
      %p208 = por %p206, %p207
      %p209 = scmp.le.s32.totalorder 1, %s20
      %p210 = scmp.lt.s32.totalorder %s20, 5
      %p211 = pnand %p209, %p210
      %p212 = pneg %p211
      // Predicated region
      $region9: #{tpu_custom_call.1} parent=5 // pred_check
        _
      $region10: #{tpu_custom_call.1} parent=5 // pred_check_branch
        %214 = sbr.rel (%p211) target = $region12
      $region11: #{tpu_custom_call.1} parent=5 // pred_region
        %s215 = ssub.s32 %s20, 1
        // Predicated region
        $region13: #{tpu_custom_call.1} parent=11 // pred_check
          %p216 = pneg %p58
        $region14: #{tpu_custom_call.1} parent=11 // pred_check_branch
          %218 = sbr.rel (%p216) target = $region16
        $region15: #{tpu_custom_call.1} parent=11 // pred_region
          %s220 = ssub.s32 256, 256
          %221 = vsyncadd [#allocation6], %s220
          %s222 = smul.addr %s29, 128
          %s223 = scalar_lea.hbm %s0, %s222
          %s224 = sshll.u32 [#allocation5], 4
          %s225 = int_to_ptr.vmem [resolvable:$true] %s224
          %230 = dma.hbm_to_vmem [thread:$0]  %s223, 256, %s225, [#allocation6], 128, 128, 8
        $region16: #{tpu_custom_call.1} parent=11 // pred_fallthru
          _
        // Predicated region
        $region17: #{tpu_custom_call.1} parent=11 // pred_check
          %p231 = pneg %p107
        $region18: #{tpu_custom_call.1} parent=11 // pred_check_branch
          %233 = sbr.rel (%p231) target = $region20
        $region19: #{tpu_custom_call.1} parent=11 // pred_region
          _
        $region20: #{tpu_custom_call.1} parent=11 // pred_fallthru
          _
        // Predicated region
        $region21: #{tpu_custom_call.1} parent=11 // pred_check
          %p234 = pneg %p128
        $region22: #{tpu_custom_call.1} parent=11 // pred_check_branch
          %236 = sbr.rel (%p234) target = $region24
        $region23: #{tpu_custom_call.1} parent=11 // pred_region
          _
        $region24: #{tpu_custom_call.1} parent=11 // pred_fallthru
          _
        // Predicated region
        $region25: #{tpu_custom_call.1} parent=11 // pred_check
          %p237 = pneg %p149
        $region26: #{tpu_custom_call.1} parent=11 // pred_check_branch
          %239 = sbr.rel (%p237) target = $region28
        $region27: #{tpu_custom_call.1} parent=11 // pred_region
          _
        $region28: #{tpu_custom_call.1} parent=11 // pred_fallthru
          _
      $region12: #{tpu_custom_call.1} parent=5 // pred_fallthru
        _
      %p240 = scmp.lt.s32.totalorder %s20, 4
      // Predicated region
      $region29: #{tpu_custom_call.1} parent=5 // pred_check
        %p241 = pneg %p240
      $region30: #{tpu_custom_call.1} parent=5 // pred_check_branch
        %243 = sbr.rel (%p241) target = $region32
      $region31: #{tpu_custom_call.1} parent=5 // pred_region
        // Predicated region
        $region33: #{tpu_custom_call.1} parent=31 // pred_check
          %p244 = pneg %p80
        $region34: #{tpu_custom_call.1} parent=31 // pred_check_branch
          %246 = sbr.rel (%p244) target = $region36
        $region35: #{tpu_custom_call.1} parent=31 // pred_region
          %s247 = sand.u32 %s70, 1
          %s248 = scalar_lea.sflag [#allocation9], %s247
          %s249 = sand.u32 %s70, 1
          %s250 = smul.addr %s249, 8
          %s251 = scalar_lea.vmem [#allocation8], %s250
          %s252 = sadd.s32 %s28, %s27
          %s254 = ssub.s32 128, 128
          %255 = vsyncadd %s248, %s254
          %s256 = smul.addr %s252, 128
          %s257 = scalar_lea.hbm %s1, %s256
          %s259 = sshll.u32 %s251, 4
          %s260 = int_to_ptr.vmem [resolvable:$true] %s259
          %262 = dma.hbm_to_vmem [thread:$0]  %s257, 128, %s260, %s248
        $region36: #{tpu_custom_call.1} parent=31 // pred_fallthru
          _
      $region32: #{tpu_custom_call.1} parent=5 // pred_fallthru
        _
      %p263 = scmp.le.s32.totalorder 1, %s20
      %p264 = scmp.lt.s32.totalorder %s20, 5
      %p265 = pnand %p263, %p264
      %p266 = pneg %p265
      // Predicated region
      $region37: #{tpu_custom_call.1} parent=5 // pred_check
        _
      $region38: #{tpu_custom_call.1} parent=5 // pred_check_branch
        %268 = sbr.rel (%p265) target = $region40
      $region39: #{tpu_custom_call.1} parent=5 // pred_region
        %s269 = ssub.s32 %s20, 1
        // Predicated region
        $region41: #{tpu_custom_call.1} parent=39 // pred_check
          %p270 = pneg %p58
        $region42: #{tpu_custom_call.1} parent=39 // pred_check_branch
          %272 = sbr.rel (%p270) target = $region44
        $region43: #{tpu_custom_call.1} parent=39 // pred_region
          %273 = dma.done [#allocation6], 256
        $region44: #{tpu_custom_call.1} parent=39 // pred_fallthru
          _
        %s274 = sand.u32 %s73, 1
        %s275 = scalar_lea.sflag [#allocation9], %s274
        %s276 = sand.u32 %s73, 1
        %s277 = smul.addr %s276, 8
        %s278 = scalar_lea.vmem [#allocation8], %s277
        // Predicated region
        $region45: #{tpu_custom_call.1} parent=39 // pred_check
          %p279 = pneg %p86
        $region46: #{tpu_custom_call.1} parent=39 // pred_check_branch
          %281 = sbr.rel (%p279) target = $region48
        $region47: #{tpu_custom_call.1} parent=39 // pred_region
          %282 = dma.done %s275, 128
        $region48: #{tpu_custom_call.1} parent=39 // pred_fallthru
          _
        %p283 = pneg %p58
        %p284 = pneg %p55
        %s285 = sand.u32 %s73, 1
        %s286 = scalar_lea.sflag [#allocation9], %s285
        %s287 = sand.u32 %s73, 1
        %s288 = smul.addr %s287, 8
        %s289 = scalar_lea.vmem [#allocation8], %s288
        %p290 = pneg %p86
        %p291 = pneg %p83
        %p292 = pneg %p107
        %p293 = pneg %p104
        %p294 = pneg %p128
        %p295 = pneg %p125
        %p296 = pneg %p149
        %p297 = pneg %p146
        %p298 = pneg %p175
        %p299 = pneg %p172
        %p300 = scmp.lt.s32.totalorder %s29, 0
        %s301 = scalar_select %p300, %s29, 0
        %s302 = smul.addr %s301, 8
        %s303 = scalar_lea.vmem %s5, %s302
        %p304 = pneg %p201
        %p305 = pneg %p198
        %s306 = sadd.s32 %s30, %s29
        %p307 = scmp.lt.s32.totalorder %s29, 0
        %s308 = scalar_select %p307, %s29, 0
        %s309 = smul.addr %s308, 8
        %s310 = scalar_lea.vmem %s5, %s309
        %s311 = sld [smem:[#allocation4]]
        %v312 = vld [vmem:[%s278] sm:$0xff]
        %v313 = vstv %s311
        %v314 = vmul.f32 %v312, %v313
        %315 = vmax.xlane.f32.xlu0 %v314
        %v316 = vpop.xlane.xlu0 %315
        %v317 = vsub.f32 %v314, %v316
        %v318 = vmul.f32 %v317, 1.442695
        %v319 = vpow.pop %v318
        %320 = vadd.xlane.f32.xlu0 %v319
        %v321 = vpop.xlane.xlu0 %320
        %v322 = vlog2.pop %v321
        %v323 = vmul.f32 %v322, 0.6931472
        %v324 = vadd.f32 %v323, %v316
        %p325 = scmp.eq.s32.totalorder %s30, 0
        // Predicated region
        $region49: #{tpu_custom_call.1} parent=39 // pred_check
          %p326 = pneg %p325
        $region50: #{tpu_custom_call.1} parent=39 // pred_check_branch
          %328 = sbr.rel (%p326) target = $region52
        $region51: #{tpu_custom_call.1} parent=39 // pred_region
          %v329 = vld [vmem:[%s2] sm:$0x1]
          %s330 = sld [smem:[#allocation3]]
          %v331 = vld [vmem:[#allocation5] sm:$0xff]
          %s332 = scalar_lea.vmem [#allocation5], 8
          %v333 = vld [vmem:[%s332] sm:$0xff]
          %v334 = vrot.slane %v331, 4
          %v335 = vadd.f32 %v331, %v334
          %v336 = vrot.slane %v335, 2
          %v337 = vadd.f32 %v335, %v336
          %v338 = vrot.slane %v337, 1
          %v339 = vadd.f32 %v337, %v338
          %v340 = vrot.slane %v333, 4
          %v341 = vadd.f32 %v333, %v340
          %v342 = vrot.slane %v341, 2
          %v343 = vadd.f32 %v341, %v342
          %v344 = vrot.slane %v343, 1
          %v345 = vadd.f32 %v343, %v344
          %v346 = vadd.f32 %v339, %v345
          %347 = vst [vmem:[#allocation10] sm:$0x1] %v346
          %v349 = vlaneseq
          %v350 = vshrl.u32 %v349, 7
          %v351 = vsub.s32 0, %v350
          %v352 = vrot.slane %v329, %v351
          %v354 = vsub.f32 %v331, %v352
          %v355 = vstv %s330
          %v356 = vmul.f32 %v354, %v355
          %357 = vmax.xlane.f32.xlu0 %v356
          %v358 = vpop.xlane.xlu0 %357
          %v359 = vsub.f32 %v356, %v358
          %v360 = vmul.f32 %v359, 1.442695
          %v361 = vpow.pop %v360
          %362 = vadd.xlane.f32.xlu0 %v361
          %v363 = vpop.xlane.xlu0 %362
          %v364 = vrcp.pop %v363
          %v365 = vmul.f32 %v363, %v364
          %v366 = vsub.f32 2.0, %v365
          %v367 = vmul.f32 %v364, %v366
          %v368 = vmul.f32 %v361, %v367
          %v369 = vsub.f32 %v333, %v352
          %v370 = vmul.f32 %v369, %v355
          %371 = vmax.xlane.f32.xlu0 %v370
          %v372 = vpop.xlane.xlu0 %371
          %v373 = vsub.f32 %v370, %v372
          %v374 = vmul.f32 %v373, 1.442695
          %v375 = vpow.pop %v374
          %376 = vadd.xlane.f32.xlu0 %v375
          %v377 = vpop.xlane.xlu0 %376
          %v378 = vrcp.pop %v377
          %v379 = vmul.f32 %v377, %v378
          %v380 = vsub.f32 2.0, %v379
          %v381 = vmul.f32 %v378, %v380
          %v382 = vmul.f32 %v375, %v381
          %383 = vst [vmem:[#allocation2] sm:$0xff] %v368
          %v384 = vadd.f32 %v368, %v382
          %s385 = scalar_lea.vmem [#allocation2], 8
          %386 = vst [vmem:[%s385] sm:$0xff] %v384
          %v387 = vmul.f32 %v382, %v314
          %388 = vadd.xlane.f32.xlu0 %v387
          %v389 = vpop.xlane.xlu0 %388
          %v390 = vsub.f32 %v324, %v389
          %vm391 = vcmask 7168
          %392 = vst.msk [vmem:[%s310] sm:$0xff] %vm391, %v390
        $region52: #{tpu_custom_call.1} parent=39 // pred_fallthru
          _
        %p393 = scmp.eq.s32.totalorder %s30, 1
        // Predicated region
        $region53: #{tpu_custom_call.1} parent=39 // pred_check
          %p394 = pneg %p393
        $region54: #{tpu_custom_call.1} parent=39 // pred_check_branch
          %396 = sbr.rel (%p394) target = $region56
        $region55: #{tpu_custom_call.1} parent=39 // pred_region
          %v397 = vld [vmem:[#allocation2] sm:$0xff]
          %v398 = vmul.f32 %v397, %v314
          %399 = vadd.xlane.f32.xlu0 %v398
          %v400 = vpop.xlane.xlu0 %399
          %v401 = vld [vmem:[%s310] sm:$0xff]
          %v402 = vsub.f32 %v324, %v400
          %v403 = vadd.f32 %v401, %v402
          %vm404 = vcmask 7168
          %405 = vst.msk [vmem:[%s310] sm:$0xff] %vm404, %v403
        $region56: #{tpu_custom_call.1} parent=39 // pred_fallthru
          _
        %p406 = scmp.ge.s32.totalorder %s30, 2
        // Predicated region
        $region57: #{tpu_custom_call.1} parent=39 // pred_check
          %p407 = pneg %p406
        $region58: #{tpu_custom_call.1} parent=39 // pred_check_branch
          %409 = sbr.rel (%p407) target = $region60
        $region59: #{tpu_custom_call.1} parent=39 // pred_region
          %s410 = scalar_lea.vmem [#allocation2], 8
          %v411 = vld [vmem:[%s410] sm:$0xff]
          %v412 = vmul.f32 %v411, %v314
          %413 = vadd.xlane.f32.xlu0 %v412
          %v414 = vpop.xlane.xlu0 %413
          %v415 = vld [vmem:[%s310] sm:$0xff]
          %v416 = vmul.f32 %v324, 2.0
          %v417 = vsub.f32 %v416, %v414
          %v418 = vadd.f32 %v415, %v417
          %vm419 = vcmask 7168
          %420 = vst.msk [vmem:[%s310] sm:$0xff] %vm419, %v418
        $region60: #{tpu_custom_call.1} parent=39 // pred_fallthru
          _
        %p421 = scmp.lt.s32.totalorder %s29, 0
        %s422 = scalar_select %p421, %s29, 0
        %s423 = smul.addr %s422, 8
        %s424 = scalar_lea.vmem %s5, %s423
        // Predicated region
        $region61: #{tpu_custom_call.1} parent=39 // pred_check
          %p425 = pneg %p172
        $region62: #{tpu_custom_call.1} parent=39 // pred_check_branch
          %427 = sbr.rel (%p425) target = $region64
        $region63: #{tpu_custom_call.1} parent=39 // pred_region
          _
        $region64: #{tpu_custom_call.1} parent=39 // pred_fallthru
          _
        // Predicated region
        $region65: #{tpu_custom_call.1} parent=39 // pred_check
          %p428 = pneg %p198
        $region66: #{tpu_custom_call.1} parent=39 // pred_check_branch
          %430 = sbr.rel (%p428) target = $region68
        $region67: #{tpu_custom_call.1} parent=39 // pred_region
          %s432 = ssub.s32 16, 16
          %433 = vsyncadd [#allocation7], %s432
          %s434 = smul.addr %s29, 16
          %s435 = scalar_lea.hbm %s6, %s434
          %s437 = sshll.u32 [#allocation10], 4
          %s438 = int_to_ptr.vmem [resolvable:$true] %s437
          %440 = dma.vmem_to_hbm [thread:$0]  %s438, 16, %s435, [#allocation7]
        $region68: #{tpu_custom_call.1} parent=39 // pred_fallthru
          _
        // Predicated region
        $region69: #{tpu_custom_call.1} parent=39 // pred_check
          %p441 = pneg %p172
        $region70: #{tpu_custom_call.1} parent=39 // pred_check_branch
          %443 = sbr.rel (%p441) target = $region72
        $region71: #{tpu_custom_call.1} parent=39 // pred_region
          %p444 = scmp.lt.s32.totalorder %s29, 0
          %s445 = scalar_select %p444, %s29, 0
          %s446 = smul.addr %s445, 8
          %s447 = scalar_lea.vmem %s5, %s446
        $region72: #{tpu_custom_call.1} parent=39 // pred_fallthru
          _
        // Predicated region
        $region73: #{tpu_custom_call.1} parent=39 // pred_check
          %p448 = pneg %p198
        $region74: #{tpu_custom_call.1} parent=39 // pred_check_branch
          %450 = sbr.rel (%p448) target = $region76
        $region75: #{tpu_custom_call.1} parent=39 // pred_region
          %451 = dma.done [#allocation7], 16
        $region76: #{tpu_custom_call.1} parent=39 // pred_fallthru
          _
      $region40: #{tpu_custom_call.1} parent=5 // pred_fallthru
        _
      %p452 = scmp.le.s32.totalorder 2, %s20
      // Predicated region
      $region77: #{tpu_custom_call.1} parent=5 // pred_check
        %p453 = pneg %p452
      $region78: #{tpu_custom_call.1} parent=5 // pred_check_branch
        %455 = sbr.rel (%p453) target = $region80
      $region79: #{tpu_custom_call.1} parent=5 // pred_region
        %s456 = ssub.s32 %s20, 2
      $region80: #{tpu_custom_call.1} parent=5 // pred_fallthru
        _
    $region6: #{tpu_custom_call.1} parent=1 // loop_footer
      %s24 = sadd.s32 1, %s20
    $region7: #{tpu_custom_call.1} parent=1 // loop_footer_branch
      %19 = sbr.rel target = $region3
    $region8: #{tpu_custom_call.1} parent=1 // loop_exit
      _
    %457 = vsyncpa [#allocation6], 1
    %s458 = scalar_lea.sflag [#allocation6], 1
    %459 = vsyncpa %s458, 1
    %460 = vsyncpa [#allocation9], 1
    %s461 = scalar_lea.sflag [#allocation9], 1
    %462 = vsyncpa %s461, 1
    %463 = vsyncpa [#allocation7], 1
    %s464 = scalar_lea.sflag [#allocation7], 1
    %465 = vsyncpa %s464, 1

</llo_original>
